<compile_context>
chip_gen: v7x
topology: tpu7x:2x2x1
jax: 0.10.0
libtpu: 0.0.40
codegen_flags: <defaults>
</compile_context>

<pallas_src>
import functools
import math

import jax
import jax.numpy as jnp
import numpy as np
from jax import lax
from jax.experimental import pallas as pl
from jax.experimental.pallas import tpu as pltpu


def _layer_norm(h, gamma, beta, eps=1e-5):
    mean = jnp.mean(h, axis=-1, keepdims=True)
    var = jnp.mean((h - mean) ** 2, axis=-1, keepdims=True)
    return (h - mean) * lax.rsqrt(var + eps) * gamma + beta


def _vmem_limit_bytes():
    # Generation-aware scoped-VMEM budget: ~75% of physical capacity
    # (v5e/v6e: ~96 MiB, v7x: ~48 MiB).  Conservative fallback if the
    # trace-time hardware query is unavailable.
    try:
        cap = int(pltpu.get_tpu_info().vmem_capacity_bytes)
        return (cap * 3) // 4
    except Exception:
        return 48 * 1024 * 1024


def _invariant_spec(shape, grid_rank, single_buffer):
    # Grid-invariant operand: constant block index => no re-DMA between steps.
    nd = len(shape)
    if grid_rank == 2:
        idx = lambda i, j, _nd=nd: (0,) * _nd
    else:
        idx = lambda i, j, k, _nd=nd: (0,) * _nd
    if single_buffer:
        # Block never changes; a second pipeline buffer is pure VMEM waste.
        return pl.BlockSpec(shape, idx, pipeline_mode=pl.Buffered(1))
    return pl.BlockSpec(shape, idx)


# ----------------------------- [A] QKV projection ----------------------------
def qkv_projection_kernel(x_ref, wq_ref, wk_ref, wv_ref, alpha_ref,
                          q_ref, k_ref, v_ref,
                          *, n_heads, theta, compute_dtype):
    f32 = jnp.float32
    cdt = compute_dtype
    d_k = q_ref.shape[-1]
    inv_sqrt_dk = 1.0 / math.sqrt(d_k)
    alpha = alpha_ref[0]                               # scalar read from SMEM

    x = x_ref[0].astype(cdt)                           # (bs, D)
    # Full-D-wide projections: widest possible MXU output tiles, done once.
    q = jnp.dot(x, wq_ref[...], preferred_element_type=f32)
    k = jnp.dot(x, wk_ref[...], preferred_element_type=f32)
    v = jnp.dot(x, wv_ref[...], preferred_element_type=f32)
    # Non-commutative activations; fold 1/sqrt(d_k) into Q once (S*D mults,
    # not H*S*S per-score-tile mults).
    q = (q + theta * jnp.sin(q)) * inv_sqrt_dk
    k = k + theta * jnp.cos(k)
    v = v + (alpha * theta) * jnp.tanh(v)
    # Head split: static lane slices written to leading-dim (head) slots so the
    # attention kernel never re-layouts in its hot loop.
    for h in range(n_heads):
        sl = slice(h * d_k, (h + 1) * d_k)
        q_ref[0, h] = q[:, sl].astype(cdt)
        k_ref[0, h] = k[:, sl].astype(cdt)
        v_ref[0, h] = v[:, sl].astype(cdt)


# -------------------- [B] flash attention + W_o merge + LN1 ------------------
# (H, bq, d_k) x (H, bkv, d_k) -> (H, bq, bkv): q @ k^T batched over heads,
# contracting the last dims (no transpose).
_SCORE_DIMS = (((2,), (2,)), ((0,), (0,)))
# (H, bq, bkv) x (H, bkv, d_k) -> (H, bq, d_k)
_PV_DIMS = (((2,), (1,)), ((0,), (0,)))


def attention_kernel(x_ref, q_ref, k_ref, v_ref, wo_ref, g1_ref, b1_ref,
                     h1_ref,
                     acc_s, m_s, l_s,
                     *, compute_dtype, recip_approx):
    f32 = jnp.float32
    cdt = compute_dtype
    ki = pl.program_id(2)

    @pl.when(ki == 0)
    def _init():
        m_s[...] = jnp.full(m_s.shape, -jnp.inf, f32)
        l_s[...] = jnp.zeros(l_s.shape, f32)
        acc_s[...] = jnp.zeros(acc_s.shape, f32)

    # Head-batched online-softmax update (single dot_general over all heads;
    # head axis is leading -> no lane slices / relayouts in the hot loop).
    q = q_ref[0]                                        # (H, bq, d_k), cdt
    k = k_ref[0]                                        # (H, bkv, d_k)
    v = v_ref[0]
    s = lax.dot_general(q, k, _SCORE_DIMS, preferred_element_type=f32)
    m_prev = m_s[...]
    m_new = jnp.maximum(m_prev, jnp.max(s, axis=-1, keepdims=True))
    a = jnp.exp(m_prev - m_new)
    p = jnp.exp(s - m_new)
    l_s[...] = a * l_s[...] + jnp.sum(p, axis=-1, keepdims=True)
    acc_s[...] = a * acc_s[...] + lax.dot_general(
        p.astype(cdt), v, _PV_DIMS, preferred_element_type=f32)
    m_s[...] = m_new

    @pl.when(ki == pl.num_programs(2) - 1)
    def _finalize():
        heads = acc_s[...] * pl.reciprocal(l_s[...], approx=recip_approx)
        n_heads = heads.shape[0]
        # concat_h(head_h) @ W_o == sum_h head_h @ W_o[h]
        # (W_o pre-reshaped to (H, d_k, D): leading-dim indexing is free.)
        attn = jnp.dot(heads[0].astype(cdt), wo_ref[0],
                       preferred_element_type=f32)
        for h in range(1, n_heads):
            attn = attn + jnp.dot(heads[h].astype(cdt), wo_ref[h],
                                  preferred_element_type=f32)
        x = x_ref[0].astype(f32)
        h1_ref[0] = _layer_norm(
            x + attn, g1_ref[...].astype(f32), b1_ref[...].astype(f32)
        ).astype(h1_ref.dtype)


# ------------------------------ [C] FFN + LN2 --------------------------------
def ffn_kernel(h1_ref, w1_ref, fb1_ref, w2_ref, fb2_ref, g2_ref, b2_ref,
               out_ref, *, compute_dtype, gelu_approx):
    f32 = jnp.float32
    cdt = compute_dtype
    h1 = h1_ref[0].astype(f32)                          # (bm, D)
    ff = jnp.dot(h1.astype(cdt), w1_ref[...], preferred_element_type=f32)
    ff = jax.nn.gelu(ff + fb1_ref[...].astype(f32), approximate=gelu_approx)
    ff = jnp.dot(ff.astype(cdt), w2_ref[...], preferred_element_type=f32)
    ff = ff + fb2_ref[...].astype(f32)
    out_ref[0] = _layer_norm(
        h1 + ff, g2_ref[...].astype(f32), b2_ref[...].astype(f32)
    ).astype(out_ref.dtype)


# --------------------------------- wrapper -----------------------------------
def nc_transformer_layer(x, params, *, n_heads, theta,
                         block_q=None, block_kv=None,
                         block_proj=None, block_ffn=None,
                         compute_dtype=jnp.float32,
                         softmax_recip_approx=False,
                         gelu_approx=False,
                         single_buffer_weights=False):
    B, S, D = x.shape
    d_ff = params["w_ff1"].shape[1]
    assert D % n_heads == 0
    d_k = D // n_heads
    H = n_heads
    cdt = jnp.dtype(compute_dtype)
    f32 = jnp.float32

    # Tile defaults (sweepable). Score tile kept asymmetric (256x128) so the
    # per-head score tile stays well inside the 64-vreg register file.
    block_q = min(S, 256) if block_q is None else block_q
    block_kv = min(S, 128) if block_kv is None else block_kv
    block_proj = min(S, 256) if block_proj is None else block_proj
    block_ffn = min(S, 256) if block_ffn is None else block_ffn
    for blk in (block_q, block_kv, block_proj, block_ffn):
        assert S % blk == 0, (S, blk)
    n_q, n_kv = S // block_q, S // block_kv
    n_proj, n_ffn = S // block_proj, S // block_ffn

    vmem_limit = _vmem_limit_bytes()

    def wcast(name):
        return params[name].astype(cdt)

    alpha = params["alpha"].reshape((1,)).astype(f32)
    w_o_heads = params["w_o"].reshape(H, d_k, D).astype(cdt)

    # ---- [A] QKV projection + non-commutative activations (once per token) --
    proj_kernel = functools.partial(
        qkv_projection_kernel, n_heads=H, theta=float(theta), compute_dtype=cdt)
    qkv_shape = jax.ShapeDtypeStruct((B, H, S, d_k), cdt)
    proj_cost = pl.CostEstimate(
        flops=int(2 * B * S * D * 3 * D),
        transcendentals=int(3 * B * S * D),
        bytes_accessed=int(B * S * D * x.dtype.itemsize
                           + 3 * D * D * cdt.itemsize
                           + 3 * B * S * D * cdt.itemsize))
    q_nc, k_nc, v_nc = pl.pallas_call(
        proj_kernel,
        out_shape=(qkv_shape, qkv_shape, qkv_shape),
        grid_spec=pltpu.PrefetchScalarGridSpec(
            num_scalar_prefetch=0,
            grid=(B, n_proj),
            in_specs=[
                pl.BlockSpec((1, block_proj, D), lambda b, si: (b, si, 0)),
                _invariant_spec((D, D), 2, single_buffer_weights),     # W_q
                _invariant_spec((D, D), 2, single_buffer_weights),     # W_k
                _invariant_spec((D, D), 2, single_buffer_weights),     # W_v
                pl.BlockSpec(memory_space=pltpu.MemorySpace.SMEM),     # alpha
            ],
            out_specs=[pl.BlockSpec((1, H, block_proj, d_k),
                                    lambda b, si: (b, 0, si, 0))] * 3),
        compiler_params=pltpu.CompilerParams(
            dimension_semantics=("parallel", "parallel"),
            vmem_limit_bytes=vmem_limit),
        cost_estimate=proj_cost,
    )(x, wcast("w_q"), wcast("w_k"), wcast("w_v"), alpha)

    # ---- [B] flash attention + W_o merge + residual + LayerNorm1 ------------
    attn_kernel = functools.partial(
        attention_kernel, compute_dtype=cdt, recip_approx=softmax_recip_approx)
    attn_cost = pl.CostEstimate(
        flops=int(4 * B * H * S * S * d_k + 2 * B * S * D * D),
        transcendentals=int(B * H * S * S + 2 * B * H * S * n_kv),
        bytes_accessed=int(B * S * D * x.dtype.itemsize           # residual
                           + B * S * D * cdt.itemsize             # q (read once)
                           + 2 * n_q * B * S * D * cdt.itemsize   # k,v re-streamed
                           + D * D * cdt.itemsize                 # W_o
                           + B * S * D * 4))                      # h1 write
    h1 = pl.pallas_call(
        attn_kernel,
        out_shape=jax.ShapeDtypeStruct((B, S, D), f32),
        grid_spec=pltpu.PrefetchScalarGridSpec(
            num_scalar_prefetch=0,
            grid=(B, n_q, n_kv),
            in_specs=[
                pl.BlockSpec((1, block_q, D), lambda b, qi, ki: (b, qi, 0)),
                pl.BlockSpec((1, H, block_q, d_k),
                             lambda b, qi, ki: (b, 0, qi, 0)),
                pl.BlockSpec((1, H, block_kv, d_k),
                             lambda b, qi, ki: (b, 0, ki, 0)),
                pl.BlockSpec((1, H, block_kv, d_k),
                             lambda b, qi, ki: (b, 0, ki, 0)),
                _invariant_spec((H, d_k, D), 3, single_buffer_weights),  # W_o
                _invariant_spec((1, D), 3, single_buffer_weights),       # g1
                _invariant_spec((1, D), 3, single_buffer_weights),       # b1
            ],
            out_specs=pl.BlockSpec((1, block_q, D), lambda b, qi, ki: (b, qi, 0)),
            scratch_shapes=[
                pltpu.VMEM((H, block_q, d_k), jnp.float32),   # running output
                pltpu.VMEM((H, block_q, 1), jnp.float32),     # running max
                pltpu.VMEM((H, block_q, 1), jnp.float32),     # running denom
            ]),
        compiler_params=pltpu.CompilerParams(
            dimension_semantics=("parallel", "parallel", "arbitrary"),
            vmem_limit_bytes=vmem_limit),
        cost_estimate=attn_cost,
    )(x, q_nc, k_nc, v_nc, w_o_heads, params["g1"], params["b1"])

    # ---- [C] GELU FFN + residual + LayerNorm2 (own call, gridded over rows) --
    ffn_k = functools.partial(ffn_kernel, compute_dtype=cdt,
                              gelu_approx=gelu_approx)
    ffn_cost = pl.CostEstimate(
        flops=int(4 * B * S * D * d_ff),
        transcendentals=int(B * S * d_ff),
        bytes_accessed=int(2 * B * S * D * 4 + 2 * D * d_ff * cdt.itemsize))
    out = pl.pallas_call(
        ffn_k,
        out_shape=jax.ShapeDtypeStruct((B, S, D), x.dtype),
        grid_spec=pltpu.PrefetchScalarGridSpec(
            num_scalar_prefetch=0,
            grid=(B, n_ffn),
            in_specs=[
                pl.BlockSpec((1, block_ffn, D), lambda b, si: (b, si, 0)),
                _invariant_spec((D, d_ff), 2, single_buffer_weights),   # W_ff1
                _invariant_spec((1, d_ff), 2, single_buffer_weights),   # b_ff1
                _invariant_spec((d_ff, D), 2, single_buffer_weights),   # W_ff2
                _invariant_spec((1, D), 2, single_buffer_weights),      # b_ff2
                _invariant_spec((1, D), 2, single_buffer_weights),      # g2
                _invariant_spec((1, D), 2, single_buffer_weights),      # b2
            ],
            out_specs=pl.BlockSpec((1, block_ffn, D), lambda b, si: (b, si, 0))),
        compiler_params=pltpu.CompilerParams(
            dimension_semantics=("parallel", "parallel"),
            vmem_limit_bytes=vmem_limit),
        cost_estimate=ffn_cost,
    )(h1, wcast("w_ff1"), params["b_ff1"], wcast("w_ff2"), params["b_ff2"],
      params["g2"], params["b2"])
    return out


# ------------------------------ pure-JAX reference ---------------------------
def reference(x, p, n_heads, theta):
    B, S, D = x.shape
    d_k = D // n_heads
    Q = x @ p["w_q"]
    K = x @ p["w_k"]
    V = x @ p["w_v"]
    Q = Q + theta * jnp.sin(Q)
    K = K + theta * jnp.cos(K)
    V = V + p["alpha"].reshape(()) * theta * jnp.tanh(V)

    def split(t):
        return t.reshape(B, S, n_heads, d_k).transpose(0, 2, 1, 3)

    Qh, Kh, Vh = split(Q), split(K), split(V)
    scores = jnp.einsum("bhqd,bhkd->bhqk", Qh, Kh) / math.sqrt(d_k)
    attn = jax.nn.softmax(scores, axis=-1)
    out = jnp.einsum("bhqk,bhkd->bhqd", attn, Vh)
    out = out.transpose(0, 2, 1, 3).reshape(B, S, D)
    attn_out = out @ p["w_o"]

    def ln(h, g, b):
        m = h.mean(-1, keepdims=True)
        v = ((h - m) ** 2).mean(-1, keepdims=True)
        return (h - m) / jnp.sqrt(v + 1e-5) * g.reshape(1, 1, -1) + b.reshape(1, 1, -1)

    h1 = ln(x + attn_out, p["g1"], p["b1"])
    ff = jax.nn.gelu(h1 @ p["w_ff1"] + p["b_ff1"].reshape(1, 1, -1),
                     approximate=False)
    ff = ff @ p["w_ff2"] + p["b_ff2"].reshape(1, 1, -1)
    return ln(h1 + ff, p["g2"], p["b2"])


if __name__ == "__main__":
    B, S, D, H, DFF = 2, 8, 32, 4, 64
    theta = 0.1

    key = jax.random.PRNGKey(0)
    ks = jax.random.split(key, 8)
    scale = 1.0 / math.sqrt(D)
    params = {
        "w_q": jax.random.normal(ks[0], (D, D), jnp.float32) * scale,
        "w_k": jax.random.normal(ks[1], (D, D), jnp.float32) * scale,
        "w_v": jax.random.normal(ks[2], (D, D), jnp.float32) * scale,
        "w_o": jax.random.normal(ks[3], (D, D), jnp.float32) * scale,
        "alpha": jnp.ones((1,), jnp.float32),
        "g1": jnp.ones((1, D), jnp.float32),
        "b1": jnp.zeros((1, D), jnp.float32),
        "g2": jnp.ones((1, D), jnp.float32),
        "b2": jnp.zeros((1, D), jnp.float32),
        "w_ff1": jax.random.normal(ks[4], (D, DFF), jnp.float32) * (1.0 / math.sqrt(D)),
        "b_ff1": jnp.zeros((1, DFF), jnp.float32),
        "w_ff2": jax.random.normal(ks[5], (DFF, D), jnp.float32) * (1.0 / math.sqrt(DFF)),
        "b_ff2": jnp.zeros((1, D), jnp.float32),
    }
    x = jax.random.normal(ks[6], (B, S, D), jnp.float32)

    # 1) f32 path, single kv tile — strict check against the pure-JAX reference
    out = jax.block_until_ready(
        nc_transformer_layer(x, params, n_heads=H, theta=theta))
    ref = jax.block_until_ready(reference(x, params, H, theta))
    np.testing.assert_allclose(np.asarray(out), np.asarray(ref),
                               atol=1e-4, rtol=1e-4)

    # 2) longer sequence split into multiple q/kv/proj/ffn tiles — exercises the
    #    flash-style online-softmax accumulation across kv grid steps and the
    #    single-pass (non-redundant) K/V projection feeding many q tiles.
    S2 = 32
    x2 = jax.random.normal(ks[7], (B, S2, D), jnp.float32)
    out2 = jax.block_until_ready(
        nc_transformer_layer(x2, params, n_heads=H, theta=theta,
                             block_q=8, block_kv=8))
    ref2 = jax.block_until_ready(reference(x2, params, H, theta))
    np.testing.assert_allclose(np.asarray(out2), np.asarray(ref2),
                               atol=1e-4, rtol=1e-4)

    # 3) bf16 MXU operands with f32 accumulation (perf path) — looser tolerance
    out_bf16 = jax.block_until_ready(
        nc_transformer_layer(x, params, n_heads=H, theta=theta,
                             compute_dtype=jnp.bfloat16))
    np.testing.assert_allclose(np.asarray(out_bf16), np.asarray(ref),
                               atol=1e-1, rtol=1e-1)

    print("KERNEL_OK")
</pallas_src>

<mosaic_0001>
module attributes {stable_mosaic.version = 11 : i64} {
  func.func @qkv_projection_kernel(%arg0: i32, %arg1: i32, %arg2: memref<1x8x32xf32, #tpu.memory_space<vmem>>, %arg3: memref<32x32xf32, #tpu.memory_space<vmem>>, %arg4: memref<32x32xf32, #tpu.memory_space<vmem>>, %arg5: memref<32x32xf32, #tpu.memory_space<vmem>>, %arg6: memref<1xf32, #tpu.memory_space<smem>>, %arg7: memref<1x4x8x8xf32, #tpu.memory_space<vmem>>, %arg8: memref<1x4x8x8xf32, #tpu.memory_space<vmem>>, %arg9: memref<1x4x8x8xf32, #tpu.memory_space<vmem>>) attributes {dimension_semantics = [#tpu.dimension_semantics<parallel>, #tpu.dimension_semantics<parallel>], iteration_bounds = array<i64: 2, 1>, scalar_prefetch = 0 : i64, scratch_operands = 0 : i64, tpu.core_type = #tpu.core_type<tc>, window_params = [{transform_indices = @transform_0, window_bounds = array<i64: 1, 8, 32>}, {pipeline_mode = #tpu.pipeline_mode<synchronous>, transform_indices = @transform_1, window_bounds = array<i64: 32, 32>}, {pipeline_mode = #tpu.pipeline_mode<synchronous>, transform_indices = @transform_2, window_bounds = array<i64: 32, 32>}, {pipeline_mode = #tpu.pipeline_mode<synchronous>, transform_indices = @transform_3, window_bounds = array<i64: 32, 32>}, {transform_indices = @transform_4, window_bounds = array<i64: 1>}, {transform_indices = @transform_5, window_bounds = array<i64: 1, 4, 8, 8>}, {transform_indices = @transform_6, window_bounds = array<i64: 1, 4, 8, 8>}, {transform_indices = @transform_7, window_bounds = array<i64: 1, 4, 8, 8>}]} {
    %c0 = arith.constant 0 : index
    %0 = memref.load %arg6[%c0] : memref<1xf32, #tpu.memory_space<smem>>
    %c0_0 = arith.constant 0 : index
    %c0_1 = arith.constant 0 : index
    %c0_2 = arith.constant 0 : index
    %1 = vector.load %arg2[%c0_0, %c0_1, %c0_2] : memref<1x8x32xf32, #tpu.memory_space<vmem>>, vector<1x8x32xf32>
    %2 = vector.shape_cast %1 : vector<1x8x32xf32> to vector<8x32xf32>
    %c0_3 = arith.constant 0 : index
    %c0_4 = arith.constant 0 : index
    %3 = vector.load %arg3[%c0_3, %c0_4] : memref<32x32xf32, #tpu.memory_space<vmem>>, vector<32x32xf32>
    %cst = arith.constant dense<0.000000e+00> : vector<8x32xf32>
    %4 = tpu.matmul %2, %3, %cst {dimension_numbers = #tpu.dot_dimension_numbers<[1], [0], [0], [1], [0, 0, 1, 1], [], []>} : vector<8x32xf32>, vector<32x32xf32>, vector<8x32xf32> -> vector<8x32xf32>
    %c0_5 = arith.constant 0 : index
    %c0_6 = arith.constant 0 : index
    %5 = vector.load %arg4[%c0_5, %c0_6] : memref<32x32xf32, #tpu.memory_space<vmem>>, vector<32x32xf32>
    %cst_7 = arith.constant dense<0.000000e+00> : vector<8x32xf32>
    %6 = tpu.matmul %2, %5, %cst_7 {dimension_numbers = #tpu.dot_dimension_numbers<[1], [0], [0], [1], [0, 0, 1, 1], [], []>} : vector<8x32xf32>, vector<32x32xf32>, vector<8x32xf32> -> vector<8x32xf32>
    %c0_8 = arith.constant 0 : index
    %c0_9 = arith.constant 0 : index
    %7 = vector.load %arg5[%c0_8, %c0_9] : memref<32x32xf32, #tpu.memory_space<vmem>>, vector<32x32xf32>
    %cst_10 = arith.constant dense<0.000000e+00> : vector<8x32xf32>
    %8 = tpu.matmul %2, %7, %cst_10 {dimension_numbers = #tpu.dot_dimension_numbers<[1], [0], [0], [1], [0, 0, 1, 1], [], []>} : vector<8x32xf32>, vector<32x32xf32>, vector<8x32xf32> -> vector<8x32xf32>
    %9 = math.sin %4 : vector<8x32xf32>
    %cst_11 = arith.constant 1.000000e-01 : f32
    %10 = vector.broadcast %cst_11 : f32 to vector<8x32xf32>
    %11 = arith.mulf %10, %9 : vector<8x32xf32>
    %12 = arith.addf %4, %11 : vector<8x32xf32>
    %cst_12 = arith.constant 0.353553385 : f32
    %13 = vector.broadcast %cst_12 : f32 to vector<8x32xf32>
    %14 = arith.mulf %12, %13 : vector<8x32xf32>
    %15 = math.cos %6 : vector<8x32xf32>
    %cst_13 = arith.constant 1.000000e-01 : f32
    %16 = vector.broadcast %cst_13 : f32 to vector<8x32xf32>
    %17 = arith.mulf %16, %15 : vector<8x32xf32>
    %18 = arith.addf %6, %17 : vector<8x32xf32>
    %cst_14 = arith.constant 1.000000e-01 : f32
    %19 = arith.mulf %0, %cst_14 : f32
    %20 = math.tanh %8 : vector<8x32xf32>
    %21 = vector.broadcast %19 : f32 to vector<8x32xf32>
    %22 = arith.mulf %21, %20 : vector<8x32xf32>
    %23 = arith.addf %8, %22 : vector<8x32xf32>
    %24 = vector.extract_strided_slice %14 {offsets = [0, 0], sizes = [8, 8], strides = [1, 1]} : vector<8x32xf32> to vector<8x8xf32>
    %c0_15 = arith.constant 0 : index
    %c0_16 = arith.constant 0 : index
    %c0_17 = arith.constant 0 : index
    %c0_18 = arith.constant 0 : index
    %25 = vector.load %arg7[%c0_15, %c0_16, %c0_17, %c0_18] : memref<1x4x8x8xf32, #tpu.memory_space<vmem>>, vector<1x1x8x8xf32>
    %26 = vector.shape_cast %25 : vector<1x1x8x8xf32> to vector<8x8xf32>
    %27 = vector.shape_cast %24 : vector<8x8xf32> to vector<1x1x8x8xf32>
    tpu.vector_store %arg7[%c0_15, %c0_16, %c0_17, %c0_18], %27 {strides = array<i32>} : memref<1x4x8x8xf32, #tpu.memory_space<vmem>>, vector<1x1x8x8xf32>,
    %28 = vector.extract_strided_slice %18 {offsets = [0, 0], sizes = [8, 8], strides = [1, 1]} : vector<8x32xf32> to vector<8x8xf32>
    %c0_19 = arith.constant 0 : index
    %c0_20 = arith.constant 0 : index
    %c0_21 = arith.constant 0 : index
    %c0_22 = arith.constant 0 : index
    %29 = vector.load %arg8[%c0_19, %c0_20, %c0_21, %c0_22] : memref<1x4x8x8xf32, #tpu.memory_space<vmem>>, vector<1x1x8x8xf32>
    %30 = vector.shape_cast %29 : vector<1x1x8x8xf32> to vector<8x8xf32>
    %31 = vector.shape_cast %28 : vector<8x8xf32> to vector<1x1x8x8xf32>
    tpu.vector_store %arg8[%c0_19, %c0_20, %c0_21, %c0_22], %31 {strides = array<i32>} : memref<1x4x8x8xf32, #tpu.memory_space<vmem>>, vector<1x1x8x8xf32>,
    %32 = vector.extract_strided_slice %23 {offsets = [0, 0], sizes = [8, 8], strides = [1, 1]} : vector<8x32xf32> to vector<8x8xf32>
    %c0_23 = arith.constant 0 : index
    %c0_24 = arith.constant 0 : index
    %c0_25 = arith.constant 0 : index
    %c0_26 = arith.constant 0 : index
    %33 = vector.load %arg9[%c0_23, %c0_24, %c0_25, %c0_26] : memref<1x4x8x8xf32, #tpu.memory_space<vmem>>, vector<1x1x8x8xf32>
    %34 = vector.shape_cast %33 : vector<1x1x8x8xf32> to vector<8x8xf32>
    %35 = vector.shape_cast %32 : vector<8x8xf32> to vector<1x1x8x8xf32>
    tpu.vector_store %arg9[%c0_23, %c0_24, %c0_25, %c0_26], %35 {strides = array<i32>} : memref<1x4x8x8xf32, #tpu.memory_space<vmem>>, vector<1x1x8x8xf32>,
    %36 = vector.extract_strided_slice %14 {offsets = [0, 8], sizes = [8, 8], strides = [1, 1]} : vector<8x32xf32> to vector<8x8xf32>
    %c0_27 = arith.constant 0 : index
    %c1 = arith.constant 1 : index
    %c0_28 = arith.constant 0 : index
    %c0_29 = arith.constant 0 : index
    %37 = vector.load %arg7[%c0_27, %c1, %c0_28, %c0_29] : memref<1x4x8x8xf32, #tpu.memory_space<vmem>>, vector<1x1x8x8xf32>
    %38 = vector.shape_cast %37 : vector<1x1x8x8xf32> to vector<8x8xf32>
    %39 = vector.shape_cast %36 : vector<8x8xf32> to vector<1x1x8x8xf32>
    tpu.vector_store %arg7[%c0_27, %c1, %c0_28, %c0_29], %39 {strides = array<i32>} : memref<1x4x8x8xf32, #tpu.memory_space<vmem>>, vector<1x1x8x8xf32>,
    %40 = vector.extract_strided_slice %18 {offsets = [0, 8], sizes = [8, 8], strides = [1, 1]} : vector<8x32xf32> to vector<8x8xf32>
    %c0_30 = arith.constant 0 : index
    %c1_31 = arith.constant 1 : index
    %c0_32 = arith.constant 0 : index
    %c0_33 = arith.constant 0 : index
    %41 = vector.load %arg8[%c0_30, %c1_31, %c0_32, %c0_33] : memref<1x4x8x8xf32, #tpu.memory_space<vmem>>, vector<1x1x8x8xf32>
    %42 = vector.shape_cast %41 : vector<1x1x8x8xf32> to vector<8x8xf32>
    %43 = vector.shape_cast %40 : vector<8x8xf32> to vector<1x1x8x8xf32>
    tpu.vector_store %arg8[%c0_30, %c1_31, %c0_32, %c0_33], %43 {strides = array<i32>} : memref<1x4x8x8xf32, #tpu.memory_space<vmem>>, vector<1x1x8x8xf32>,
    %44 = vector.extract_strided_slice %23 {offsets = [0, 8], sizes = [8, 8], strides = [1, 1]} : vector<8x32xf32> to vector<8x8xf32>
    %c0_34 = arith.constant 0 : index
    %c1_35 = arith.constant 1 : index
    %c0_36 = arith.constant 0 : index
    %c0_37 = arith.constant 0 : index
    %45 = vector.load %arg9[%c0_34, %c1_35, %c0_36, %c0_37] : memref<1x4x8x8xf32, #tpu.memory_space<vmem>>, vector<1x1x8x8xf32>
    %46 = vector.shape_cast %45 : vector<1x1x8x8xf32> to vector<8x8xf32>
    %47 = vector.shape_cast %44 : vector<8x8xf32> to vector<1x1x8x8xf32>
    tpu.vector_store %arg9[%c0_34, %c1_35, %c0_36, %c0_37], %47 {strides = array<i32>} : memref<1x4x8x8xf32, #tpu.memory_space<vmem>>, vector<1x1x8x8xf32>,
    %48 = vector.extract_strided_slice %14 {offsets = [0, 16], sizes = [8, 8], strides = [1, 1]} : vector<8x32xf32> to vector<8x8xf32>
    %c0_38 = arith.constant 0 : index
    %c2 = arith.constant 2 : index
    %c0_39 = arith.constant 0 : index
    %c0_40 = arith.constant 0 : index
    %49 = vector.load %arg7[%c0_38, %c2, %c0_39, %c0_40] : memref<1x4x8x8xf32, #tpu.memory_space<vmem>>, vector<1x1x8x8xf32>
    %50 = vector.shape_cast %49 : vector<1x1x8x8xf32> to vector<8x8xf32>
    %51 = vector.shape_cast %48 : vector<8x8xf32> to vector<1x1x8x8xf32>
    tpu.vector_store %arg7[%c0_38, %c2, %c0_39, %c0_40], %51 {strides = array<i32>} : memref<1x4x8x8xf32, #tpu.memory_space<vmem>>, vector<1x1x8x8xf32>,
    %52 = vector.extract_strided_slice %18 {offsets = [0, 16], sizes = [8, 8], strides = [1, 1]} : vector<8x32xf32> to vector<8x8xf32>
    %c0_41 = arith.constant 0 : index
    %c2_42 = arith.constant 2 : index
    %c0_43 = arith.constant 0 : index
    %c0_44 = arith.constant 0 : index
    %53 = vector.load %arg8[%c0_41, %c2_42, %c0_43, %c0_44] : memref<1x4x8x8xf32, #tpu.memory_space<vmem>>, vector<1x1x8x8xf32>
    %54 = vector.shape_cast %53 : vector<1x1x8x8xf32> to vector<8x8xf32>
    %55 = vector.shape_cast %52 : vector<8x8xf32> to vector<1x1x8x8xf32>
    tpu.vector_store %arg8[%c0_41, %c2_42, %c0_43, %c0_44], %55 {strides = array<i32>} : memref<1x4x8x8xf32, #tpu.memory_space<vmem>>, vector<1x1x8x8xf32>,
    %56 = vector.extract_strided_slice %23 {offsets = [0, 16], sizes = [8, 8], strides = [1, 1]} : vector<8x32xf32> to vector<8x8xf32>
    %c0_45 = arith.constant 0 : index
    %c2_46 = arith.constant 2 : index
    %c0_47 = arith.constant 0 : index
    %c0_48 = arith.constant 0 : index
    %57 = vector.load %arg9[%c0_45, %c2_46, %c0_47, %c0_48] : memref<1x4x8x8xf32, #tpu.memory_space<vmem>>, vector<1x1x8x8xf32>
    %58 = vector.shape_cast %57 : vector<1x1x8x8xf32> to vector<8x8xf32>
    %59 = vector.shape_cast %56 : vector<8x8xf32> to vector<1x1x8x8xf32>
    tpu.vector_store %arg9[%c0_45, %c2_46, %c0_47, %c0_48], %59 {strides = array<i32>} : memref<1x4x8x8xf32, #tpu.memory_space<vmem>>, vector<1x1x8x8xf32>,
    %60 = vector.extract_strided_slice %14 {offsets = [0, 24], sizes = [8, 8], strides = [1, 1]} : vector<8x32xf32> to vector<8x8xf32>
    %c0_49 = arith.constant 0 : index
    %c3 = arith.constant 3 : index
    %c0_50 = arith.constant 0 : index
    %c0_51 = arith.constant 0 : index
    %61 = vector.load %arg7[%c0_49, %c3, %c0_50, %c0_51] : memref<1x4x8x8xf32, #tpu.memory_space<vmem>>, vector<1x1x8x8xf32>
    %62 = vector.shape_cast %61 : vector<1x1x8x8xf32> to vector<8x8xf32>
    %63 = vector.shape_cast %60 : vector<8x8xf32> to vector<1x1x8x8xf32>
    tpu.vector_store %arg7[%c0_49, %c3, %c0_50, %c0_51], %63 {strides = array<i32>} : memref<1x4x8x8xf32, #tpu.memory_space<vmem>>, vector<1x1x8x8xf32>,
    %64 = vector.extract_strided_slice %18 {offsets = [0, 24], sizes = [8, 8], strides = [1, 1]} : vector<8x32xf32> to vector<8x8xf32>
    %c0_52 = arith.constant 0 : index
    %c3_53 = arith.constant 3 : index
    %c0_54 = arith.constant 0 : index
    %c0_55 = arith.constant 0 : index
    %65 = vector.load %arg8[%c0_52, %c3_53, %c0_54, %c0_55] : memref<1x4x8x8xf32, #tpu.memory_space<vmem>>, vector<1x1x8x8xf32>
    %66 = vector.shape_cast %65 : vector<1x1x8x8xf32> to vector<8x8xf32>
    %67 = vector.shape_cast %64 : vector<8x8xf32> to vector<1x1x8x8xf32>
    tpu.vector_store %arg8[%c0_52, %c3_53, %c0_54, %c0_55], %67 {strides = array<i32>} : memref<1x4x8x8xf32, #tpu.memory_space<vmem>>, vector<1x1x8x8xf32>,
    %68 = vector.extract_strided_slice %23 {offsets = [0, 24], sizes = [8, 8], strides = [1, 1]} : vector<8x32xf32> to vector<8x8xf32>
    %c0_56 = arith.constant 0 : index
    %c3_57 = arith.constant 3 : index
    %c0_58 = arith.constant 0 : index
    %c0_59 = arith.constant 0 : index
    %69 = vector.load %arg9[%c0_56, %c3_57, %c0_58, %c0_59] : memref<1x4x8x8xf32, #tpu.memory_space<vmem>>, vector<1x1x8x8xf32>
    %70 = vector.shape_cast %69 : vector<1x1x8x8xf32> to vector<8x8xf32>
    %71 = vector.shape_cast %68 : vector<8x8xf32> to vector<1x1x8x8xf32>
    tpu.vector_store %arg9[%c0_56, %c3_57, %c0_58, %c0_59], %71 {strides = array<i32>} : memref<1x4x8x8xf32, #tpu.memory_space<vmem>>, vector<1x1x8x8xf32>,
    return
  }
  func.func @transform_0(%arg0: i32, %arg1: i32) -> (i32, i32, i32) {
    %c0_i32 = arith.constant 0 : i32
    %c0_i32_0 = arith.constant 0 : i32
    return %arg0, %arg1, %c0_i32 : i32, i32, i32
  }
  func.func @transform_1(%arg0: i32, %arg1: i32) -> (i32, i32) {
    %c0_i32 = arith.constant 0 : i32
    %c0_i32_0 = arith.constant 0 : i32
    %c0_i32_1 = arith.constant 0 : i32
    return %c0_i32, %c0_i32_0 : i32, i32
  }
  func.func @transform_2(%arg0: i32, %arg1: i32) -> (i32, i32) {
    %c0_i32 = arith.constant 0 : i32
    %c0_i32_0 = arith.constant 0 : i32
    %c0_i32_1 = arith.constant 0 : i32
    return %c0_i32, %c0_i32_0 : i32, i32
  }
  func.func @transform_3(%arg0: i32, %arg1: i32) -> (i32, i32) {
    %c0_i32 = arith.constant 0 : i32
    %c0_i32_0 = arith.constant 0 : i32
    %c0_i32_1 = arith.constant 0 : i32
    return %c0_i32, %c0_i32_0 : i32, i32
  }
  func.func @transform_4(%arg0: i32, %arg1: i32) -> i32 {
    %c0_i32 = arith.constant 0 : i32
    %c0_i32_0 = arith.constant 0 : i32
    return %c0_i32 : i32
  }
  func.func @transform_5(%arg0: i32, %arg1: i32) -> (i32, i32, i32, i32) {
    %c0_i32 = arith.constant 0 : i32
    %c0_i32_0 = arith.constant 0 : i32
    %c0_i32_1 = arith.constant 0 : i32
    return %arg0, %c0_i32, %arg1, %c0_i32_0 : i32, i32, i32, i32
  }
  func.func @transform_6(%arg0: i32, %arg1: i32) -> (i32, i32, i32, i32) {
    %c0_i32 = arith.constant 0 : i32
    %c0_i32_0 = arith.constant 0 : i32
    %c0_i32_1 = arith.constant 0 : i32
    return %arg0, %c0_i32, %arg1, %c0_i32_0 : i32, i32, i32, i32
  }
  func.func @transform_7(%arg0: i32, %arg1: i32) -> (i32, i32, i32, i32) {
    %c0_i32 = arith.constant 0 : i32
    %c0_i32_0 = arith.constant 0 : i32
    %c0_i32_1 = arith.constant 0 : i32
    return %arg0, %c0_i32, %arg1, %c0_i32_0 : i32, i32, i32, i32
  }
}

</mosaic_0001>

<llo_original>
// kernel: tpu_custom_call.1
$region0: #{tpu_custom_call.1}
  #allocation0 [shape = 'u32[]', space=smem, size = 0x4, offset = 0x4, fixed_abs, tag = 'smem constant byte address 0x4 - core index']
  #allocation1 [shape = 'u32[144,128]{1,0:T(1,128)}', space=vmem, size = 0x12000, scoped, tag = 'internal scratch']
  #allocation2 [shape = 'f32[1]{0:T(128)S(6)}', space=smem, size = 0x200, scoped, tag = 'scoped memory for tpu_custom_call.1']
  %s0 = inlined_call_operand.hbm [shape: f32[2,8,32], index: 0, kind: input, shape index: {}]
  %s1 = inlined_call_operand.hbm [shape: f32[32,32], index: 1, kind: input, shape index: {}]
  %s2 = inlined_call_operand.hbm [shape: f32[32,32], index: 2, kind: input, shape index: {}]
  %s3 = inlined_call_operand.hbm [shape: f32[32,32], index: 3, kind: input, shape index: {}]
  %s4 = inlined_call_operand.<no memory space> [shape: f32[1], index: 4, kind: input, shape index: {}]
  %s5 = inlined_call_operand.hbm [shape: f32[2,4,8,8], index: 5, kind: output, shape index: {0}]
  %s6 = inlined_call_operand.hbm [shape: f32[2,4,8,8], index: 6, kind: output, shape index: {1}]
  %s7 = inlined_call_operand.hbm [shape: f32[2,4,8,8], index: 7, kind: output, shape index: {2}]
  %8 = xla_tuple %s5, %s6, %s7
  %s9 = sld [smem:[#allocation0]]
  $region85: #{tpu_custom_call.1} parent=0
    _
  %s11 = ssub.s32 1, %s9
  %s12 = scalar_select 0, %s11, %s9
  %13 = sst [smem:[#allocation2]] %s4
  $region1: #{tpu_custom_call.1} parent=0
    #allocation3 [shape = 'u8[8192]{0}', space=vmem, size = 0x2000, scoped, tag = 'input window, operand 0']
    #allocation4 [shape = 's32[2]{0}', space=sflag, size = 0x8, scoped, tag = 'scoped memory for tpu_custom_call.1']
    #allocation5 [shape = 's32[2]{0}', space=sflag, size = 0x8, scoped, tag = 'scoped memory for tpu_custom_call.1']
    #allocation6 [shape = 'u8[16384]{0}', space=vmem, size = 0x4000, scoped, tag = 'input window, operand 1, single buffered']
    #allocation7 [shape = 's32[1]{0}', space=sflag, size = 0x4, scoped, tag = 'scoped memory for tpu_custom_call.1']
    #allocation8 [shape = 'u8[16384]{0}', space=vmem, size = 0x4000, scoped, tag = 'input window, operand 2, single buffered']
    #allocation9 [shape = 'u8[16384]{0}', space=vmem, size = 0x4000, scoped, tag = 'input window, operand 3, single buffered']
    #allocation10 [shape = 's32[1]{0}', space=sflag, size = 0x4, scoped, tag = 'scoped memory for tpu_custom_call.1']
    #allocation11 [shape = 'u8[32768]{0}', space=vmem, size = 0x8000, scoped, tag = 'output window, operand 0']
    #allocation12 [shape = 'u8[32768]{0}', space=vmem, size = 0x8000, scoped, tag = 'output window, operand 1']
    #allocation13 [shape = 's32[2]{0}', space=sflag, size = 0x8, scoped, tag = 'scoped memory for tpu_custom_call.1']
    #allocation14 [shape = 'u8[32768]{0}', space=vmem, size = 0x8000, scoped, tag = 'output window, operand 2']
    %14 = vsyncpa [#allocation4], 0
    %s15 = scalar_lea.sflag [#allocation4], 1
    %16 = vsyncpa %s15, 0
    %17 = vsyncpa [#allocation7], 0
    %18 = vsyncpa [#allocation10], 0
    %19 = vsyncpa [#allocation5], 0
    %s20 = scalar_lea.sflag [#allocation5], 1
    %21 = vsyncpa %s20, 0
    %22 = vsyncpa [#allocation13], 0
    %s23 = scalar_lea.sflag [#allocation13], 1
    %24 = vsyncpa %s23, 0
    loop: start=0, step=1, limit=4
    $region2: #{tpu_custom_call.1} parent=1 // loop_pre_header
      _
    $region3: #{tpu_custom_call.1} parent=1 // loop_header
      %s26 = sphi 0, %s30
      %p27 = scmp.ge.s32.totalorder %s26, 4
      %s33 = sphi 0, %s45
      %s34 = sphi 0, %s41
      %s35 = sphi 0, %s33
      %s36 = sphi 0, %s34
      %s37 = sphi 0, %s35
      %s38 = sphi 0, %s36
      %s50 = sphi 0, %s52
      %s53 = sphi 0, %s50
      %s54 = sphi 0, %s53
      %s70 = sphi 0, %s54
      %s74 = sphi 0, %s74
      %s76 = sphi 0, %s74
      %s77 = sphi 0, %s76
      %s91 = sphi 0, %s77
      %s95 = sphi 0, %s95
      %s97 = sphi 0, %s95
      %s98 = sphi 0, %s97
      %s112 = sphi 0, %s98
      %s116 = sphi 0, %s116
      %s118 = sphi 0, %s116
      %s119 = sphi 0, %s118
      %s133 = sphi 0, %s119
      %s137 = sphi 0, %s137
      %s139 = sphi 0, %s137
      %s140 = sphi 0, %s139
      %s154 = sphi 0, %s140
      %s162 = sphi 0, %s164
      %s165 = sphi 0, %s162
      %s166 = sphi 0, %s165
      %s182 = sphi 0, %s166
      %s190 = sphi 0, %s192
      %s193 = sphi 0, %s190
      %s194 = sphi 0, %s193
      %s210 = sphi 0, %s194
      %s218 = sphi 0, %s220
      %s221 = sphi 0, %s218
      %s222 = sphi 0, %s221
      %s238 = sphi 0, %s222
    $region4: #{tpu_custom_call.1} parent=1 // loop_header_branch
      %29 = sbr.rel (%p27) target = $region8
    $region5: #{tpu_custom_call.1} parent=1 // loop_body
      %s31 = ssub.s32 %s26, 1
      %s32 = ssub.s32 %s26, 2
      %s39 = sadd.s32 1, %s34
      %p40 = scmp.ge.s32.totalorder %s39, 1
      %s41 = scalar_select %p40, 0, %s39
      %s42 = sadd.s32 1, %s33
      %s43 = scalar_select %p40, %s42, %s33
      %p44 = scmp.ge.s32.totalorder %s43, 2
      %s45 = scalar_select %p44, 0, %s43
      %s46 = ssub.s32 %s33, %s45
      %s47 = ssub.s32 %s34, %s41
      %s48 = sor.u32 %s46, %s47
      %p49 = scmp.eq.s32.totalorder %s48, 0
      %s51 = sadd.s32 %s50, 1
      %s52 = scalar_select %p49, %s50, %s51
      %p55 = pneg %p49
      %p56 = scmp.eq.s32.totalorder %s26, 1
      %p57 = por %p55, %p56
      %p58 = scmp.ne.s32.totalorder %s50, %s53
      %p59 = scmp.eq.s32.totalorder %s26, 0
      %p60 = por %p58, %p59
      %p61 = scmp.ne.s32.totalorder %s50, %s53
      %p62 = scmp.eq.s32.totalorder %s31, 1
      %p63 = por %p61, %p62
      %p64 = scmp.ne.s32.totalorder %s53, %s54
      %p65 = scmp.eq.s32.totalorder %s31, 0
      %p66 = por %p64, %p65
      %p67 = scmp.ne.s32.totalorder %s53, %s54
      %p68 = scmp.eq.s32.totalorder %s32, 1
      %p69 = por %p67, %p68
      %p71 = scmp.ne.s32.totalorder %s54, %s70
      %p72 = scmp.eq.s32.totalorder %s32, 0
      %p73 = por %p71, %p72
      %s75 = sadd.s32 %s74, 1
      %p78 = scmp.eq.s32.totalorder %s26, 1
      %p79 = scmp.ne.s32.totalorder %s74, %s76
      %p80 = scmp.eq.s32.totalorder %s26, 0
      %p81 = por %p79, %p80
      %p82 = scmp.ne.s32.totalorder %s74, %s76
      %p83 = scmp.eq.s32.totalorder %s31, 1
      %p84 = por %p82, %p83
      %p85 = scmp.ne.s32.totalorder %s76, %s77
      %p86 = scmp.eq.s32.totalorder %s31, 0
      %p87 = por %p85, %p86
      %p88 = scmp.ne.s32.totalorder %s76, %s77
      %p89 = scmp.eq.s32.totalorder %s32, 1
      %p90 = por %p88, %p89
      %p92 = scmp.ne.s32.totalorder %s77, %s91
      %p93 = scmp.eq.s32.totalorder %s32, 0
      %p94 = por %p92, %p93
      %s96 = sadd.s32 %s95, 1
      %p99 = scmp.eq.s32.totalorder %s26, 1
      %p100 = scmp.ne.s32.totalorder %s95, %s97
      %p101 = scmp.eq.s32.totalorder %s26, 0
      %p102 = por %p100, %p101
      %p103 = scmp.ne.s32.totalorder %s95, %s97
      %p104 = scmp.eq.s32.totalorder %s31, 1
      %p105 = por %p103, %p104
      %p106 = scmp.ne.s32.totalorder %s97, %s98
      %p107 = scmp.eq.s32.totalorder %s31, 0
      %p108 = por %p106, %p107
      %p109 = scmp.ne.s32.totalorder %s97, %s98
      %p110 = scmp.eq.s32.totalorder %s32, 1
      %p111 = por %p109, %p110
      %p113 = scmp.ne.s32.totalorder %s98, %s112
      %p114 = scmp.eq.s32.totalorder %s32, 0
      %p115 = por %p113, %p114
      %s117 = sadd.s32 %s116, 1
      %p120 = scmp.eq.s32.totalorder %s26, 1
      %p121 = scmp.ne.s32.totalorder %s116, %s118
      %p122 = scmp.eq.s32.totalorder %s26, 0
      %p123 = por %p121, %p122
      %p124 = scmp.ne.s32.totalorder %s116, %s118
      %p125 = scmp.eq.s32.totalorder %s31, 1
      %p126 = por %p124, %p125
      %p127 = scmp.ne.s32.totalorder %s118, %s119
      %p128 = scmp.eq.s32.totalorder %s31, 0
      %p129 = por %p127, %p128
      %p130 = scmp.ne.s32.totalorder %s118, %s119
      %p131 = scmp.eq.s32.totalorder %s32, 1
      %p132 = por %p130, %p131
      %p134 = scmp.ne.s32.totalorder %s119, %s133
      %p135 = scmp.eq.s32.totalorder %s32, 0
      %p136 = por %p134, %p135
      %s138 = sadd.s32 %s137, 1
      %p141 = scmp.eq.s32.totalorder %s26, 1
      %p142 = scmp.ne.s32.totalorder %s137, %s139
      %p143 = scmp.eq.s32.totalorder %s26, 0
      %p144 = por %p142, %p143
      %p145 = scmp.ne.s32.totalorder %s137, %s139
      %p146 = scmp.eq.s32.totalorder %s31, 1
      %p147 = por %p145, %p146
      %p148 = scmp.ne.s32.totalorder %s139, %s140
      %p149 = scmp.eq.s32.totalorder %s31, 0
      %p150 = por %p148, %p149
      %p151 = scmp.ne.s32.totalorder %s139, %s140
      %p152 = scmp.eq.s32.totalorder %s32, 1
      %p153 = por %p151, %p152
      %p155 = scmp.ne.s32.totalorder %s140, %s154
      %p156 = scmp.eq.s32.totalorder %s32, 0
      %p157 = por %p155, %p156
      %s158 = ssub.s32 %s33, %s45
      %s159 = ssub.s32 %s34, %s41
      %s160 = sor.u32 %s158, %s159
      %p161 = scmp.eq.s32.totalorder %s160, 0
      %s163 = sadd.s32 %s162, 1
      %s164 = scalar_select %p161, %s162, %s163
      %p167 = pneg %p161
      %p168 = scmp.eq.s32.totalorder %s26, 1
      %p169 = por %p167, %p168
      %p170 = scmp.ne.s32.totalorder %s162, %s165
      %p171 = scmp.eq.s32.totalorder %s26, 0
      %p172 = por %p170, %p171
      %p173 = scmp.ne.s32.totalorder %s162, %s165
      %p174 = scmp.eq.s32.totalorder %s31, 1
      %p175 = por %p173, %p174
      %p176 = scmp.ne.s32.totalorder %s165, %s166
      %p177 = scmp.eq.s32.totalorder %s31, 0
      %p178 = por %p176, %p177
      %p179 = scmp.ne.s32.totalorder %s165, %s166
      %p180 = scmp.eq.s32.totalorder %s32, 1
      %p181 = por %p179, %p180
      %p183 = scmp.ne.s32.totalorder %s166, %s182
      %p184 = scmp.eq.s32.totalorder %s32, 0
      %p185 = por %p183, %p184
      %s186 = ssub.s32 %s33, %s45
      %s187 = ssub.s32 %s34, %s41
      %s188 = sor.u32 %s186, %s187
      %p189 = scmp.eq.s32.totalorder %s188, 0
      %s191 = sadd.s32 %s190, 1
      %s192 = scalar_select %p189, %s190, %s191
      %p195 = pneg %p189
      %p196 = scmp.eq.s32.totalorder %s26, 1
      %p197 = por %p195, %p196
      %p198 = scmp.ne.s32.totalorder %s190, %s193
      %p199 = scmp.eq.s32.totalorder %s26, 0
      %p200 = por %p198, %p199
      %p201 = scmp.ne.s32.totalorder %s190, %s193
      %p202 = scmp.eq.s32.totalorder %s31, 1
      %p203 = por %p201, %p202
      %p204 = scmp.ne.s32.totalorder %s193, %s194
      %p205 = scmp.eq.s32.totalorder %s31, 0
      %p206 = por %p204, %p205
      %p207 = scmp.ne.s32.totalorder %s193, %s194
      %p208 = scmp.eq.s32.totalorder %s32, 1
      %p209 = por %p207, %p208
      %p211 = scmp.ne.s32.totalorder %s194, %s210
      %p212 = scmp.eq.s32.totalorder %s32, 0
      %p213 = por %p211, %p212
      %s214 = ssub.s32 %s33, %s45
      %s215 = ssub.s32 %s34, %s41
      %s216 = sor.u32 %s214, %s215
      %p217 = scmp.eq.s32.totalorder %s216, 0
      %s219 = sadd.s32 %s218, 1
      %s220 = scalar_select %p217, %s218, %s219
      %p223 = pneg %p217
      %p224 = scmp.eq.s32.totalorder %s26, 1
      %p225 = por %p223, %p224
      %p226 = scmp.ne.s32.totalorder %s218, %s221
      %p227 = scmp.eq.s32.totalorder %s26, 0
      %p228 = por %p226, %p227
      %p229 = scmp.ne.s32.totalorder %s218, %s221
      %p230 = scmp.eq.s32.totalorder %s31, 1
      %p231 = por %p229, %p230
      %p232 = scmp.ne.s32.totalorder %s221, %s222
      %p233 = scmp.eq.s32.totalorder %s31, 0
      %p234 = por %p232, %p233
      %p235 = scmp.ne.s32.totalorder %s221, %s222
      %p236 = scmp.eq.s32.totalorder %s32, 1
      %p237 = por %p235, %p236
      %p239 = scmp.ne.s32.totalorder %s222, %s238
      %p240 = scmp.eq.s32.totalorder %s32, 0
      %p241 = por %p239, %p240
      %p242 = scmp.le.s32.totalorder 1, %s26
      %p243 = scmp.lt.s32.totalorder %s26, 3
      %p244 = pnand %p242, %p243
      %p245 = pneg %p244
      // Predicated region
      $region9: #{tpu_custom_call.1} parent=5 // pred_check
        _
      $region10: #{tpu_custom_call.1} parent=5 // pred_check_branch
        %247 = sbr.rel (%p244) target = $region12
      $region11: #{tpu_custom_call.1} parent=5 // pred_region
        %s248 = ssub.s32 %s26, 1
        // Predicated region
        $region13: #{tpu_custom_call.1} parent=11 // pred_check
          %p249 = pneg %p87
        $region14: #{tpu_custom_call.1} parent=11 // pred_check_branch
          %251 = sbr.rel (%p249) target = $region16
        $region15: #{tpu_custom_call.1} parent=11 // pred_region
          %s253 = ssub.s32 512, 512
          %254 = vsyncadd [#allocation7], %s253
          %s255 = sshll.u32 [#allocation6], 4
          %s256 = int_to_ptr.vmem [resolvable:$true] %s255
          %261 = dma.hbm_to_vmem [thread:$0]  %s1, 512, %s256, [#allocation7], 128, 128, 8
        $region16: #{tpu_custom_call.1} parent=11 // pred_fallthru
          _
        // Predicated region
        $region17: #{tpu_custom_call.1} parent=11 // pred_check
          %p262 = pneg %p108
        $region18: #{tpu_custom_call.1} parent=11 // pred_check_branch
          %264 = sbr.rel (%p262) target = $region20
        $region19: #{tpu_custom_call.1} parent=11 // pred_region
          %s266 = ssub.s32 512, 512
          %267 = vsyncadd [#allocation7], %s266
          %s268 = sshll.u32 [#allocation8], 4
          %s269 = int_to_ptr.vmem [resolvable:$true] %s268
          %274 = dma.hbm_to_vmem [thread:$0]  %s2, 512, %s269, [#allocation7], 128, 128, 8
        $region20: #{tpu_custom_call.1} parent=11 // pred_fallthru
          _
        // Predicated region
        $region21: #{tpu_custom_call.1} parent=11 // pred_check
          %p275 = pneg %p129
        $region22: #{tpu_custom_call.1} parent=11 // pred_check_branch
          %277 = sbr.rel (%p275) target = $region24
        $region23: #{tpu_custom_call.1} parent=11 // pred_region
          %s279 = ssub.s32 512, 512
          %280 = vsyncadd [#allocation10], %s279
          %s281 = sshll.u32 [#allocation9], 4
          %s282 = int_to_ptr.vmem [resolvable:$true] %s281
          %287 = dma.hbm_to_vmem [thread:$0]  %s3, 512, %s282, [#allocation10], 128, 128, 8
        $region24: #{tpu_custom_call.1} parent=11 // pred_fallthru
          _
        // Predicated region
        $region25: #{tpu_custom_call.1} parent=11 // pred_check
          %p288 = pneg %p150
        $region26: #{tpu_custom_call.1} parent=11 // pred_check_branch
          %290 = sbr.rel (%p288) target = $region28
        $region27: #{tpu_custom_call.1} parent=11 // pred_region
          _
        $region28: #{tpu_custom_call.1} parent=11 // pred_fallthru
          _
      $region12: #{tpu_custom_call.1} parent=5 // pred_fallthru
        _
      %p291 = scmp.lt.s32.totalorder %s26, 2
      // Predicated region
      $region29: #{tpu_custom_call.1} parent=5 // pred_check
        %p292 = pneg %p291
      $region30: #{tpu_custom_call.1} parent=5 // pred_check_branch
        %294 = sbr.rel (%p292) target = $region32
      $region31: #{tpu_custom_call.1} parent=5 // pred_region
        // Predicated region
        $region33: #{tpu_custom_call.1} parent=31 // pred_check
          %p295 = pneg %p60
        $region34: #{tpu_custom_call.1} parent=31 // pred_check_branch
          %297 = sbr.rel (%p295) target = $region36
        $region35: #{tpu_custom_call.1} parent=31 // pred_region
          %s298 = sand.u32 %s50, 1
          %s299 = scalar_lea.sflag [#allocation4], %s298
          %s300 = sand.u32 %s50, 1
          %s301 = smul.addr %s300, 8
          %s302 = scalar_lea.vmem [#allocation3], %s301
          %s304 = ssub.s32 128, 128
          %305 = vsyncadd %s299, %s304
          %s306 = sadd.s32 %s34, %s33
          %s307 = smul.addr %s306, 128
          %s308 = scalar_lea.hbm %s0, %s307
          %s310 = sshll.u32 %s302, 4
          %s311 = int_to_ptr.vmem [resolvable:$true] %s310
          %313 = dma.hbm_to_vmem [thread:$0]  %s308, 128, %s311, %s299
        $region36: #{tpu_custom_call.1} parent=31 // pred_fallthru
          _
      $region32: #{tpu_custom_call.1} parent=5 // pred_fallthru
        _
      %p314 = scmp.le.s32.totalorder 1, %s26
      %p315 = scmp.lt.s32.totalorder %s26, 3
      %p316 = pnand %p314, %p315
      %p317 = pneg %p316
      // Predicated region
      $region37: #{tpu_custom_call.1} parent=5 // pred_check
        _
      $region38: #{tpu_custom_call.1} parent=5 // pred_check_branch
        %319 = sbr.rel (%p316) target = $region40
      $region39: #{tpu_custom_call.1} parent=5 // pred_region
        %s320 = ssub.s32 %s26, 1
        %s321 = sand.u32 %s53, 1
        %s322 = scalar_lea.sflag [#allocation4], %s321
        %s323 = sand.u32 %s53, 1
        %s324 = smul.addr %s323, 8
        %s325 = scalar_lea.vmem [#allocation3], %s324
        // Predicated region
        $region41: #{tpu_custom_call.1} parent=39 // pred_check
          %p326 = pneg %p66
        $region42: #{tpu_custom_call.1} parent=39 // pred_check_branch
          %328 = sbr.rel (%p326) target = $region44
        $region43: #{tpu_custom_call.1} parent=39 // pred_region
          %329 = dma.done %s322, 128
        $region44: #{tpu_custom_call.1} parent=39 // pred_fallthru
          _
        // Predicated region
        $region45: #{tpu_custom_call.1} parent=39 // pred_check
          %p330 = pneg %p87
        $region46: #{tpu_custom_call.1} parent=39 // pred_check_branch
          %332 = sbr.rel (%p330) target = $region48
        $region47: #{tpu_custom_call.1} parent=39 // pred_region
          %333 = dma.done [#allocation7], 512
        $region48: #{tpu_custom_call.1} parent=39 // pred_fallthru
          _
        // Predicated region
        $region49: #{tpu_custom_call.1} parent=39 // pred_check
          %p334 = pneg %p108
        $region50: #{tpu_custom_call.1} parent=39 // pred_check_branch
          %336 = sbr.rel (%p334) target = $region52
        $region51: #{tpu_custom_call.1} parent=39 // pred_region
          %337 = dma.done [#allocation7], 512
        $region52: #{tpu_custom_call.1} parent=39 // pred_fallthru
          _
        // Predicated region
        $region53: #{tpu_custom_call.1} parent=39 // pred_check
          %p338 = pneg %p129
        $region54: #{tpu_custom_call.1} parent=39 // pred_check_branch
          %340 = sbr.rel (%p338) target = $region56
        $region55: #{tpu_custom_call.1} parent=39 // pred_region
          %341 = dma.done [#allocation10], 512
        $region56: #{tpu_custom_call.1} parent=39 // pred_fallthru
          _
        %s342 = sand.u32 %s53, 1
        %s343 = scalar_lea.sflag [#allocation4], %s342
        %s344 = sand.u32 %s53, 1
        %s345 = smul.addr %s344, 8
        %s346 = scalar_lea.vmem [#allocation3], %s345
        %p347 = pneg %p66
        %p348 = pneg %p63
        %p349 = pneg %p87
        %p350 = pneg %p84
        %p351 = pneg %p108
        %p352 = pneg %p105
        %p353 = pneg %p129
        %p354 = pneg %p126
        %p355 = pneg %p150
        %p356 = pneg %p147
        %p357 = pneg %p178
        %p358 = pneg %p175
        %s359 = sand.u32 %s165, 1
        %s360 = scalar_lea.sflag [#allocation5], %s359
        %s361 = sand.u32 %s165, 1
        %s362 = smul.addr %s361, 32
        %s363 = scalar_lea.vmem [#allocation11], %s362
        %p364 = pneg %p206
        %p365 = pneg %p203
        %s366 = sand.u32 %s31, 1
        %s367 = scalar_lea.sflag [#allocation13], %s366
        %s368 = sand.u32 %s193, 1
        %s369 = smul.addr %s368, 32
        %s370 = scalar_lea.vmem [#allocation12], %s369
        %p371 = pneg %p234
        %p372 = pneg %p231
        %s373 = sand.u32 %s31, 1
        %s374 = scalar_lea.sflag [#allocation13], %s373
        %s375 = sand.u32 %s221, 1
        %s376 = smul.addr %s375, 32
        %s377 = scalar_lea.vmem [#allocation14], %s376
        %s378 = sld [smem:[#allocation2]]
        %v379 = vld [vmem:[%s325] sm:$0xff]
        %v380 = vld [vmem:[#allocation6] sm:$0xff]
        %v381 = vld [vmem:[#allocation6 + $0x8] sm:$0xff]
        %v382 = vld [vmem:[#allocation6 + $0x10] sm:$0xff]
        %v383 = vld [vmem:[#allocation6 + $0x18] sm:$0xff]
        %vm384 = vcmask 261120
        %v386 = vsel %vm384, %v379, 0
        %388 = vmatprep.subr.mxu0 0.0
        %389 = vmatpush1.msra.mxu0 %v380
        %390 = vmatprep.subr.mxu0 0.0
        %391 = vmatpush1.msra.mxu0 %v381
        %392 = vmatprep.subr.mxu0 0.0
        %393 = vmatpush1.msra.mxu0 %v382
        %394 = vmatprep.subr.mxu0 0.0
        %395 = vmatpush1.msra.mxu0 %v383
        %396 = vmatprep.subr.mxu0 0.0
        %397 = vmatpush1.msra.mxu0 0.0
        %398 = vmatprep.subr.mxu0 0.0
        %399 = vmatpush1.msra.mxu0 0.0
        %400 = vmatprep.subr.mxu0 0.0
        %401 = vmatpush1.msra.mxu0 0.0
        %402 = vmatprep.subr.mxu0 0.0
        %403 = vmatpush1.msra.mxu0 0.0
        %404 = vmatprep.subr.mxu0 0.0
        %405 = vmatpush1.msra.mxu0 0.0
        %406 = vmatprep.subr.mxu0 0.0
        %407 = vmatpush1.msra.mxu0 0.0
        %408 = vmatprep.subr.mxu0 0.0
        %409 = vmatpush1.msra.mxu0 0.0
        %410 = vmatprep.subr.mxu0 0.0
        %411 = vmatpush1.msra.mxu0 0.0
        %412 = vmatprep.subr.mxu0 0.0
        %413 = vmatpush1.msra.mxu0 0.0
        %414 = vmatprep.subr.mxu0 0.0
        %415 = vmatpush1.msra.mxu0 0.0
        %416 = vmatprep.subr.mxu0 0.0
        %417 = vmatpush1.msra.mxu0 0.0
        %418 = vmatprep.subr.mxu0 0.0
        %419 = vmatpush1.msra.mxu0 0.0
        %420 = vmatprep.subr.mxu0 0.0
        %421 = vmatpush1.msra.mxu0 0.0
        %422 = vmatprep.subr.mxu0 0.0
        %423 = vmatpush1.msra.mxu0 0.0
        %424 = vmatprep.subr.mxu0 0.0
        %425 = vmatpush1.msra.mxu0 0.0
        %426 = vmatprep.subr.mxu0 0.0
        %427 = vmatpush1.msra.mxu0 0.0
        %428 = vmatprep.subr.mxu0 0.0
        %429 = vmatpush1.msra.mxu0 0.0
        %430 = vmatprep.subr.mxu0 0.0
        %431 = vmatpush1.msra.mxu0 0.0
        %432 = vmatprep.subr.mxu0 0.0
        %433 = vmatpush1.msra.mxu0 0.0
        %434 = vmatprep.subr.mxu0 0.0
        %435 = vmatpush1.msra.mxu0 0.0
        %436 = vmatprep.subr.mxu0 0.0
        %437 = vmatpush1.msra.mxu0 0.0
        %438 = vmatprep.subr.mxu0 0.0
        %439 = vmatpush1.msra.mxu0 0.0
        %440 = vmatprep.subr.mxu0 0.0
        %441 = vmatpush1.msra.mxu0 0.0
        %442 = vmatprep.subr.mxu0 0.0
        %443 = vmatpush1.msra.mxu0 0.0
        %444 = vmatprep.subr.mxu0 0.0
        %445 = vmatpush1.msra.mxu0 0.0
        %446 = vmatprep.subr.mxu0 0.0
        %447 = vmatpush1.msra.mxu0 0.0
        %448 = vmatprep.subr.mxu0 0.0
        %449 = vmatpush1.msra.mxu0 0.0
        %450 = vmatprep.subr.mxu0 0.0
        %451 = vmatpush1.msra.mxu0 0.0
        %452 = vmatprep.mubr.f32.mxu0 0.0
        %453 = vmatmul.mubr.f32.gmra.mrb[0].mxu0 %v386
        %v454 = vpop.f32.mrb[0].mxu0
        %v455 = vadd.f32 0.0, %v454
        %v456 = vpop.f32.mrb[0].mxu0
        %457 = vdwg.mxu0
        %v458 = vld [vmem:[#allocation8] sm:$0xff]
        %v459 = vld [vmem:[#allocation8 + $0x8] sm:$0xff]
        %v460 = vld [vmem:[#allocation8 + $0x10] sm:$0xff]
        %v461 = vld [vmem:[#allocation8 + $0x18] sm:$0xff]
        %462 = vmatprep.subr.mxu0 0.0
        %463 = vmatpush1.msra.mxu0 %v458
        %464 = vmatprep.subr.mxu0 0.0
        %465 = vmatpush1.msra.mxu0 %v459
        %466 = vmatprep.subr.mxu0 0.0
        %467 = vmatpush1.msra.mxu0 %v460
        %468 = vmatprep.subr.mxu0 0.0
        %469 = vmatpush1.msra.mxu0 %v461
        %470 = vmatprep.subr.mxu0 0.0
        %471 = vmatpush1.msra.mxu0 0.0
        %472 = vmatprep.subr.mxu0 0.0
        %473 = vmatpush1.msra.mxu0 0.0
        %474 = vmatprep.subr.mxu0 0.0
        %475 = vmatpush1.msra.mxu0 0.0
        %476 = vmatprep.subr.mxu0 0.0
        %477 = vmatpush1.msra.mxu0 0.0
        %478 = vmatprep.subr.mxu0 0.0
        %479 = vmatpush1.msra.mxu0 0.0
        %480 = vmatprep.subr.mxu0 0.0
        %481 = vmatpush1.msra.mxu0 0.0
        %482 = vmatprep.subr.mxu0 0.0
        %483 = vmatpush1.msra.mxu0 0.0
        %484 = vmatprep.subr.mxu0 0.0
        %485 = vmatpush1.msra.mxu0 0.0
        %486 = vmatprep.subr.mxu0 0.0
        %487 = vmatpush1.msra.mxu0 0.0
        %488 = vmatprep.subr.mxu0 0.0
        %489 = vmatpush1.msra.mxu0 0.0
        %490 = vmatprep.subr.mxu0 0.0
        %491 = vmatpush1.msra.mxu0 0.0
        %492 = vmatprep.subr.mxu0 0.0
        %493 = vmatpush1.msra.mxu0 0.0
        %494 = vmatprep.subr.mxu0 0.0
        %495 = vmatpush1.msra.mxu0 0.0
        %496 = vmatprep.subr.mxu0 0.0
        %497 = vmatpush1.msra.mxu0 0.0
        %498 = vmatprep.subr.mxu0 0.0
        %499 = vmatpush1.msra.mxu0 0.0
        %500 = vmatprep.subr.mxu0 0.0
        %501 = vmatpush1.msra.mxu0 0.0
        %502 = vmatprep.subr.mxu0 0.0
        %503 = vmatpush1.msra.mxu0 0.0
        %504 = vmatprep.subr.mxu0 0.0
        %505 = vmatpush1.msra.mxu0 0.0
        %506 = vmatprep.subr.mxu0 0.0
        %507 = vmatpush1.msra.mxu0 0.0
        %508 = vmatprep.subr.mxu0 0.0
        %509 = vmatpush1.msra.mxu0 0.0
        %510 = vmatprep.subr.mxu0 0.0
        %511 = vmatpush1.msra.mxu0 0.0
        %512 = vmatprep.subr.mxu0 0.0
        %513 = vmatpush1.msra.mxu0 0.0
        %514 = vmatprep.subr.mxu0 0.0
        %515 = vmatpush1.msra.mxu0 0.0
        %516 = vmatprep.subr.mxu0 0.0
        %517 = vmatpush1.msra.mxu0 0.0
        %518 = vmatprep.subr.mxu0 0.0
        %519 = vmatpush1.msra.mxu0 0.0
        %520 = vmatprep.subr.mxu0 0.0
        %521 = vmatpush1.msra.mxu0 0.0
        %522 = vmatprep.subr.mxu0 0.0
        %523 = vmatpush1.msra.mxu0 0.0
        %524 = vmatprep.subr.mxu0 0.0
        %525 = vmatpush1.msra.mxu0 0.0
        %526 = vmatprep.mubr.f32.mxu0 0.0
        %527 = vmatmul.mubr.f32.gmra.mrb[0].mxu0 %v386
        %v528 = vpop.f32.mrb[0].mxu0
        %v529 = vadd.f32 0.0, %v528
        %v530 = vpop.f32.mrb[0].mxu0
        %531 = vdwg.mxu0
        %v532 = vld [vmem:[#allocation9] sm:$0xff]
        %v533 = vld [vmem:[#allocation9 + $0x8] sm:$0xff]
        %v534 = vld [vmem:[#allocation9 + $0x10] sm:$0xff]
        %v535 = vld [vmem:[#allocation9 + $0x18] sm:$0xff]
        %536 = vmatprep.subr.mxu0 0.0
        %537 = vmatpush1.msra.mxu0 %v532
        %538 = vmatprep.subr.mxu0 0.0
        %539 = vmatpush1.msra.mxu0 %v533
        %540 = vmatprep.subr.mxu0 0.0
        %541 = vmatpush1.msra.mxu0 %v534
        %542 = vmatprep.subr.mxu0 0.0
        %543 = vmatpush1.msra.mxu0 %v535
        %544 = vmatprep.subr.mxu0 0.0
        %545 = vmatpush1.msra.mxu0 0.0
        %546 = vmatprep.subr.mxu0 0.0
        %547 = vmatpush1.msra.mxu0 0.0
        %548 = vmatprep.subr.mxu0 0.0
        %549 = vmatpush1.msra.mxu0 0.0
        %550 = vmatprep.subr.mxu0 0.0
        %551 = vmatpush1.msra.mxu0 0.0
        %552 = vmatprep.subr.mxu0 0.0
        %553 = vmatpush1.msra.mxu0 0.0
        %554 = vmatprep.subr.mxu0 0.0
        %555 = vmatpush1.msra.mxu0 0.0
        %556 = vmatprep.subr.mxu0 0.0
        %557 = vmatpush1.msra.mxu0 0.0
        %558 = vmatprep.subr.mxu0 0.0
        %559 = vmatpush1.msra.mxu0 0.0
        %560 = vmatprep.subr.mxu0 0.0
        %561 = vmatpush1.msra.mxu0 0.0
        %562 = vmatprep.subr.mxu0 0.0
        %563 = vmatpush1.msra.mxu0 0.0
        %564 = vmatprep.subr.mxu0 0.0
        %565 = vmatpush1.msra.mxu0 0.0
        %566 = vmatprep.subr.mxu0 0.0
        %567 = vmatpush1.msra.mxu0 0.0
        %568 = vmatprep.subr.mxu0 0.0
        %569 = vmatpush1.msra.mxu0 0.0
        %570 = vmatprep.subr.mxu0 0.0
        %571 = vmatpush1.msra.mxu0 0.0
        %572 = vmatprep.subr.mxu0 0.0
        %573 = vmatpush1.msra.mxu0 0.0
        %574 = vmatprep.subr.mxu0 0.0
        %575 = vmatpush1.msra.mxu0 0.0
        %576 = vmatprep.subr.mxu0 0.0
        %577 = vmatpush1.msra.mxu0 0.0
        %578 = vmatprep.subr.mxu0 0.0
        %579 = vmatpush1.msra.mxu0 0.0
        %580 = vmatprep.subr.mxu0 0.0
        %581 = vmatpush1.msra.mxu0 0.0
        %582 = vmatprep.subr.mxu0 0.0
        %583 = vmatpush1.msra.mxu0 0.0
        %584 = vmatprep.subr.mxu0 0.0
        %585 = vmatpush1.msra.mxu0 0.0
        %586 = vmatprep.subr.mxu0 0.0
        %587 = vmatpush1.msra.mxu0 0.0
        %588 = vmatprep.subr.mxu0 0.0
        %589 = vmatpush1.msra.mxu0 0.0
        %590 = vmatprep.subr.mxu0 0.0
        %591 = vmatpush1.msra.mxu0 0.0
        %592 = vmatprep.subr.mxu0 0.0
        %593 = vmatpush1.msra.mxu0 0.0
        %594 = vmatprep.subr.mxu0 0.0
        %595 = vmatpush1.msra.mxu0 0.0
        %596 = vmatprep.subr.mxu0 0.0
        %597 = vmatpush1.msra.mxu0 0.0
        %598 = vmatprep.subr.mxu0 0.0
        %599 = vmatpush1.msra.mxu0 0.0
        %600 = vmatprep.mubr.f32.mxu0 0.0
        %601 = vmatmul.mubr.f32.gmra.mrb[0].mxu0 %v386
        %v602 = vpop.f32.mrb[0].mxu0
        %v603 = vadd.f32 0.0, %v602
        %v604 = vpop.f32.mrb[0].mxu0
        %605 = vdwg.mxu0
        %v606 = vand.u32 2147483647, %v455
        %vm607 = vcmp.le.f32.partialorder %v606, 0.7853982
        %vm608 = vcmp.lt.s32.totalorder %v455, 0
        %v609 = vand.u32 %v455, 2139095040
        %v610 = vshrl.u32 %v609, 23
        %v611 = vsub.s32 %v610, 127
        %v612 = vand.u32 2147483647, %v455
        %v613 = vand.u32 %v612, 8388607
        %v614 = vor.u32 %v613, 8388608
        %v615 = vsub.s32 0, %v614
        %v616 = vadd.s32 %v611, 1
        %vm617 = vcmp.gt.s32.totalorder %v616, 0
        %v618 = vsel %vm617, %v616, 0
        %v619 = vshrl.u32 %v618, 5
        %v620 = vand.u32 %v618, 31
        %v621 = vsub.s32 32, %v620
        %v622 = vshrl.u32 683565275, %v621
        %v623 = vshll.u32 683565275, %v620
        %v624 = vshrl.u32 2475754826, %v621
        %v625 = vor.u32 %v623, %v624
        %v626 = vshll.u32 2475754826, %v620
        %v627 = vshrl.u32 2131351028, %v621
        %v628 = vor.u32 %v626, %v627
        %v629 = vshll.u32 2131351028, %v620
        %v630 = vshrl.u32 2102212464, %v621
        %v631 = vor.u32 %v629, %v630
        %v632 = vshll.u32 2102212464, %v620
        %v633 = vshrl.u32 920167782, %v621
        %v634 = vor.u32 %v632, %v633
        %v635 = vshll.u32 920167782, %v620
        %v636 = vshrl.u32 1326507024, %v621
        %v637 = vor.u32 %v635, %v636
        %vm638 = vcmp.lt.s32.totalorder %v619, 1
        %vm639 = vcmp.lt.s32.totalorder %v619, 2
        %vm640 = vcmp.lt.s32.totalorder %v619, 3
        %vm641 = vcmp.lt.s32.totalorder %v619, 4
        %v642 = vsel %vm638, %v622, %v625
        %v643 = vsel %vm641, %v631, 2102212464
        %v644 = vsel %vm640, %v628, %v643
        %v645 = vsel %vm639, %v642, %v644
        %v646 = vsel %vm638, %v625, %v628
        %v647 = vsel %vm641, %v634, 920167782
        %v648 = vsel %vm640, %v631, %v647
        %v649 = vsel %vm639, %v646, %v648
        %v650 = vsel %vm638, %v628, %v631
        %v651 = vsel %vm641, %v637, 1326507024
        %v652 = vsel %vm640, %v634, %v651
        %v653 = vsel %vm639, %v650, %v652
        %v654 = vshll.u32 %v614, 8
        %v655 = vmul.u32.u64.compose %v654, %v653
        %v656 = vextract.low.u32 %v655
        %v657 = vextract.high.u32 %v655
        %v658 = vmul.u32.u64.compose %v654, %v649
        %v659 = vextract.low.u32 %v658
        %v660 = vextract.high.u32 %v658
        %v661 = vmul.u32 %v654, %v645
        %v662 = vadd.s32 %v657, %v659
        %vm663 = vc.u32 %v657, %v659
        %v664 = vadd.s32 %v660, 1
        %v665 = vsel %vm663, %v664, %v660
        %v666 = vadd.s32 %v661, %v665
        %v667 = vadd.s32 %v666, 536870912
        %v668 = vshrl.u32 %v667, 30
        %v669 = vshll.u32 %v668, 30
        %v670 = vsub.s32 %v666, %v669
        %vm671 = vcmp.lt.s32.totalorder %v670, 0
        %v672 = vsub.s32 0, %v670
        %v673 = vsel %vm671, %v672, %v670
        %v674 = vclz %v673
        %v675 = vsub.s32 %v674, 2
        %vm676 = vcmp.gt.s32.totalorder 0, %v675
        %v677 = vsel %vm676, 0, %v675
        %v678 = vsub.s32 32, %v677
        %v679 = vshll.u32 %v670, %v677
        %v680 = vshrl.u32 %v662, %v678
        %v681 = vor.u32 %v679, %v680
        %v682 = vsub.s32 4294967266, %v677
        %v683 = vadd.s32 %v682, 127
        %v684 = vshll.u32 %v683, 23
        %v685 = vor.u32 4788187, %v684
        %v686 = vand.u32 2147483647, %v685
        %v688 = vcvt.s32.f32 %v681
        %v689 = vmul.f32 %v688, %v686
        %v690 = vxor.u32 %v689, 2147483648
        %v691 = vsel %vm608, %v690, %v689
        %v692 = vsub.s32 4, %v668
        %v693 = vsel %vm608, %v692, %v668
        %v694 = vsel %vm607, %v455, %v691
        %v695 = vsel %vm607, 0, %v693
        %v696 = vcosq.f32.pop %v694
        %v697 = vsinq.f32.pop %v694
        %vm698 = vweird.f32 %v455
        %v699 = vadd.s32 %v695, 3
        %v700 = vand.u32 %v699, 3
        %vm701 = vcmp.lt.s32.totalorder %v700, 2
        %vm702 = vcmp.eq.s32.totalorder %v700, 0
        %v703 = vxor.u32 %v697, 2147483648
        %v704 = vsel %vm702, %v696, %v703
        %vm705 = vcmp.eq.s32.totalorder %v700, 2
        %v706 = vxor.u32 %v696, 2147483648
        %v707 = vsel %vm705, %v706, %v697
        %v708 = vsel %vm701, %v704, %v707
        %v709 = vsel %vm698, nan, %v708
        %v710 = vmul.f32 %v709, 0.1
        %v711 = vadd.f32 %v455, %v710
        %v712 = vmul.f32 %v711, 0.35355338
        %v713 = vand.u32 2147483647, %v529
        %vm714 = vcmp.le.f32.partialorder %v713, 0.7853982
        %vm715 = vcmp.lt.s32.totalorder %v529, 0
        %v716 = vand.u32 %v529, 2139095040
        %v717 = vshrl.u32 %v716, 23
        %v718 = vsub.s32 %v717, 127
        %v719 = vand.u32 2147483647, %v529
        %v720 = vand.u32 %v719, 8388607
        %v721 = vor.u32 %v720, 8388608
        %v722 = vsub.s32 0, %v721
        %v723 = vadd.s32 %v718, 1
        %vm724 = vcmp.gt.s32.totalorder %v723, 0
        %v725 = vsel %vm724, %v723, 0
        %v726 = vshrl.u32 %v725, 5
        %v727 = vand.u32 %v725, 31
        %v728 = vsub.s32 32, %v727
        %v729 = vshrl.u32 683565275, %v728
        %v730 = vshll.u32 683565275, %v727
        %v731 = vshrl.u32 2475754826, %v728
        %v732 = vor.u32 %v730, %v731
        %v733 = vshll.u32 2475754826, %v727
        %v734 = vshrl.u32 2131351028, %v728
        %v735 = vor.u32 %v733, %v734
        %v736 = vshll.u32 2131351028, %v727
        %v737 = vshrl.u32 2102212464, %v728
        %v738 = vor.u32 %v736, %v737
        %v739 = vshll.u32 2102212464, %v727
        %v740 = vshrl.u32 920167782, %v728
        %v741 = vor.u32 %v739, %v740
        %v742 = vshll.u32 920167782, %v727
        %v743 = vshrl.u32 1326507024, %v728
        %v744 = vor.u32 %v742, %v743
        %vm745 = vcmp.lt.s32.totalorder %v726, 1
        %vm746 = vcmp.lt.s32.totalorder %v726, 2
        %vm747 = vcmp.lt.s32.totalorder %v726, 3
        %vm748 = vcmp.lt.s32.totalorder %v726, 4
        %v749 = vsel %vm745, %v729, %v732
        %v750 = vsel %vm748, %v738, 2102212464
        %v751 = vsel %vm747, %v735, %v750
        %v752 = vsel %vm746, %v749, %v751
        %v753 = vsel %vm745, %v732, %v735
        %v754 = vsel %vm748, %v741, 920167782
        %v755 = vsel %vm747, %v738, %v754
        %v756 = vsel %vm746, %v753, %v755
        %v757 = vsel %vm745, %v735, %v738
        %v758 = vsel %vm748, %v744, 1326507024
        %v759 = vsel %vm747, %v741, %v758
        %v760 = vsel %vm746, %v757, %v759
        %v761 = vshll.u32 %v721, 8
        %v762 = vmul.u32.u64.compose %v761, %v760
        %v763 = vextract.low.u32 %v762
        %v764 = vextract.high.u32 %v762
        %v765 = vmul.u32.u64.compose %v761, %v756
        %v766 = vextract.low.u32 %v765
        %v767 = vextract.high.u32 %v765
        %v768 = vmul.u32 %v761, %v752
        %v769 = vadd.s32 %v764, %v766
        %vm770 = vc.u32 %v764, %v766
        %v771 = vadd.s32 %v767, 1
        %v772 = vsel %vm770, %v771, %v767
        %v773 = vadd.s32 %v768, %v772
        %v774 = vadd.s32 %v773, 536870912
        %v775 = vshrl.u32 %v774, 30
        %v776 = vshll.u32 %v775, 30
        %v777 = vsub.s32 %v773, %v776
        %vm778 = vcmp.lt.s32.totalorder %v777, 0
        %v779 = vsub.s32 0, %v777
        %v780 = vsel %vm778, %v779, %v777
        %v781 = vclz %v780
        %v782 = vsub.s32 %v781, 2
        %vm783 = vcmp.gt.s32.totalorder 0, %v782
        %v784 = vsel %vm783, 0, %v782
        %v785 = vsub.s32 32, %v784
        %v786 = vshll.u32 %v777, %v784
        %v787 = vshrl.u32 %v769, %v785
        %v788 = vor.u32 %v786, %v787
        %v789 = vsub.s32 4294967266, %v784
        %v790 = vadd.s32 %v789, 127
        %v791 = vshll.u32 %v790, 23
        %v792 = vor.u32 4788187, %v791
        %v793 = vand.u32 2147483647, %v792
        %v795 = vcvt.s32.f32 %v788
        %v796 = vmul.f32 %v795, %v793
        %v797 = vxor.u32 %v796, 2147483648
        %v798 = vsel %vm715, %v797, %v796
        %v799 = vsub.s32 4, %v775
        %v800 = vsel %vm715, %v799, %v775
        %v801 = vsel %vm714, %v529, %v798
        %v802 = vsel %vm714, 0, %v800
        %v803 = vcosq.f32.pop %v801
        %v804 = vsinq.f32.pop %v801
        %vm805 = vweird.f32 %v529
        %v806 = vand.u32 %v802, 3
        %vm807 = vcmp.lt.s32.totalorder %v806, 2
        %vm808 = vcmp.eq.s32.totalorder %v806, 0
        %v809 = vxor.u32 %v804, 2147483648
        %v810 = vsel %vm808, %v803, %v809
        %vm811 = vcmp.eq.s32.totalorder %v806, 2
        %v812 = vxor.u32 %v803, 2147483648
        %v813 = vsel %vm811, %v812, %v804
        %v814 = vsel %vm807, %v810, %v813
        %v815 = vsel %vm805, nan, %v814
        %v816 = vmul.f32 %v815, 0.1
        %v817 = vadd.f32 %v529, %v816
        %s818 = smul.f32 %s378, 0.1
        %v819 = vtanh.pop %v603
        %v820 = vstv %s818
        %v821 = vmul.f32 %v820, %v819
        %v822 = vadd.f32 %v603, %v821
        %vm823 = vcmask 64512
        %824 = vst.msk [vmem:[%s363] sm:$0xff] %vm823, %v712
        %825 = vst.msk [vmem:[%s370] sm:$0xff] %vm823, %v817
        %826 = vst.msk [vmem:[%s377] sm:$0xff] %vm823, %v822
        %828 = vrot.lane.b32.xlu0 %v712, 120
        %v829 = vpop.permute.xlu0 %828
        %s831 = scalar_lea.vmem %s363, 8 [#allocation11]
        %832 = vst.msk [vmem:[%s831] sm:$0xff] %vm823, %v829
        %834 = vrot.lane.b32.xlu0 %v817, 120
        %v835 = vpop.permute.xlu0 %834
        %s837 = scalar_lea.vmem %s370, 8 [#allocation12]
        %838 = vst.msk [vmem:[%s837] sm:$0xff] %vm823, %v835
        %840 = vrot.lane.b32.xlu0 %v822, 120
        %v841 = vpop.permute.xlu0 %840
        %s843 = scalar_lea.vmem %s377, 8 [#allocation14]
        %844 = vst.msk [vmem:[%s843] sm:$0xff] %vm823, %v841
        %845 = vrot.lane.b32.xlu0 %v712, 112
        %v846 = vpop.permute.xlu0 %845
        %s848 = scalar_lea.vmem %s363, 16 [#allocation11]
        %849 = vst.msk [vmem:[%s848] sm:$0xff] %vm823, %v846
        %850 = vrot.lane.b32.xlu0 %v817, 112
        %v851 = vpop.permute.xlu0 %850
        %s853 = scalar_lea.vmem %s370, 16 [#allocation12]
        %854 = vst.msk [vmem:[%s853] sm:$0xff] %vm823, %v851
        %855 = vrot.lane.b32.xlu0 %v822, 112
        %v856 = vpop.permute.xlu0 %855
        %s858 = scalar_lea.vmem %s377, 16 [#allocation14]
        %859 = vst.msk [vmem:[%s858] sm:$0xff] %vm823, %v856
        %860 = vrot.lane.b32.xlu0 %v712, 104
        %v861 = vpop.permute.xlu0 %860
        %s863 = scalar_lea.vmem %s363, 24 [#allocation11]
        %864 = vst.msk [vmem:[%s863] sm:$0xff] %vm823, %v861
        %865 = vrot.lane.b32.xlu0 %v817, 104
        %v866 = vpop.permute.xlu0 %865
        %s868 = scalar_lea.vmem %s370, 24 [#allocation12]
        %869 = vst.msk [vmem:[%s868] sm:$0xff] %vm823, %v866
        %870 = vrot.lane.b32.xlu0 %v822, 104
        %v871 = vpop.permute.xlu0 %870
        %s873 = scalar_lea.vmem %s377, 24 [#allocation14]
        %874 = vst.msk [vmem:[%s873] sm:$0xff] %vm823, %v871
        %s875 = sand.u32 %s165, 1
        %s876 = scalar_lea.sflag [#allocation5], %s875
        %s877 = sand.u32 %s165, 1
        %s878 = smul.addr %s877, 32
        %s879 = scalar_lea.vmem [#allocation11], %s878
        %s880 = sand.u32 %s31, 1
        %s881 = scalar_lea.sflag [#allocation13], %s880
        %s882 = sand.u32 %s193, 1
        %s883 = smul.addr %s882, 32
        %s884 = scalar_lea.vmem [#allocation12], %s883
        %s885 = sand.u32 %s31, 1
        %s886 = scalar_lea.sflag [#allocation13], %s885
        %s887 = sand.u32 %s221, 1
        %s888 = smul.addr %s887, 32
        %s889 = scalar_lea.vmem [#allocation14], %s888
        // Predicated region
        $region57: #{tpu_custom_call.1} parent=39 // pred_check
          %p890 = pneg %p175
        $region58: #{tpu_custom_call.1} parent=39 // pred_check_branch
          %892 = sbr.rel (%p890) target = $region60
        $region59: #{tpu_custom_call.1} parent=39 // pred_region
          %s894 = ssub.s32 512, 512
          %895 = vsyncadd %s876, %s894
          %s896 = smul.addr %s35, 4
          %s897 = sadd.s32 %s36, %s896
          %s898 = smul.addr %s897, 128
          %s899 = scalar_lea.hbm %s5, %s898
          %s900 = sshll.u32 %s879, 4
          %s901 = int_to_ptr.vmem [resolvable:$true] %s900
          %906 = dma.vmem_to_hbm [thread:$0]  %s901, 512, %s899, %s876, 128, 128, 8
        $region60: #{tpu_custom_call.1} parent=39 // pred_fallthru
          _
        // Predicated region
        $region61: #{tpu_custom_call.1} parent=39 // pred_check
          %p907 = pneg %p203
        $region62: #{tpu_custom_call.1} parent=39 // pred_check_branch
          %909 = sbr.rel (%p907) target = $region64
        $region63: #{tpu_custom_call.1} parent=39 // pred_region
          %s911 = ssub.s32 512, 512
          %912 = vsyncadd %s881, %s911
          %s913 = smul.addr %s35, 4
          %s914 = sadd.s32 %s36, %s913
          %s915 = smul.addr %s914, 128
          %s916 = scalar_lea.hbm %s6, %s915
          %s917 = sshll.u32 %s884, 4
          %s918 = int_to_ptr.vmem [resolvable:$true] %s917
          %923 = dma.vmem_to_hbm [thread:$0]  %s918, 512, %s916, %s881, 128, 128, 8
        $region64: #{tpu_custom_call.1} parent=39 // pred_fallthru
          _
        // Predicated region
        $region65: #{tpu_custom_call.1} parent=39 // pred_check
          %p924 = pneg %p231
        $region66: #{tpu_custom_call.1} parent=39 // pred_check_branch
          %926 = sbr.rel (%p924) target = $region68
        $region67: #{tpu_custom_call.1} parent=39 // pred_region
          %s928 = ssub.s32 512, 512
          %929 = vsyncadd %s886, %s928
          %s930 = smul.addr %s35, 4
          %s931 = sadd.s32 %s36, %s930
          %s932 = smul.addr %s931, 128
          %s933 = scalar_lea.hbm %s7, %s932
          %s934 = sshll.u32 %s889, 4
          %s935 = int_to_ptr.vmem [resolvable:$true] %s934
          %940 = dma.vmem_to_hbm [thread:$0]  %s935, 512, %s933, %s886, 128, 128, 8
        $region68: #{tpu_custom_call.1} parent=39 // pred_fallthru
          _
      $region40: #{tpu_custom_call.1} parent=5 // pred_fallthru
        _
      %p941 = scmp.le.s32.totalorder 2, %s26
      // Predicated region
      $region69: #{tpu_custom_call.1} parent=5 // pred_check
        %p942 = pneg %p941
      $region70: #{tpu_custom_call.1} parent=5 // pred_check_branch
        %944 = sbr.rel (%p942) target = $region72
      $region71: #{tpu_custom_call.1} parent=5 // pred_region
        %s945 = ssub.s32 %s26, 2
        // Predicated region
        $region73: #{tpu_custom_call.1} parent=71 // pred_check
          %p946 = pneg %p181
        $region74: #{tpu_custom_call.1} parent=71 // pred_check_branch
          %948 = sbr.rel (%p946) target = $region76
        $region75: #{tpu_custom_call.1} parent=71 // pred_region
          %s949 = sand.u32 %s166, 1
          %s950 = scalar_lea.sflag [#allocation5], %s949
          %s951 = sand.u32 %s166, 1
          %s952 = smul.addr %s951, 32
          %s953 = scalar_lea.vmem [#allocation11], %s952
          %954 = dma.done %s950, 512
        $region76: #{tpu_custom_call.1} parent=71 // pred_fallthru
          _
        // Predicated region
        $region77: #{tpu_custom_call.1} parent=71 // pred_check
          %p955 = pneg %p209
        $region78: #{tpu_custom_call.1} parent=71 // pred_check_branch
          %957 = sbr.rel (%p955) target = $region80
        $region79: #{tpu_custom_call.1} parent=71 // pred_region
          %s958 = sand.u32 %s32, 1
          %s959 = scalar_lea.sflag [#allocation13], %s958
          %s960 = sand.u32 %s194, 1
          %s961 = smul.addr %s960, 32
          %s962 = scalar_lea.vmem [#allocation12], %s961
          %963 = dma.done %s959, 512
        $region80: #{tpu_custom_call.1} parent=71 // pred_fallthru
          _
        // Predicated region
        $region81: #{tpu_custom_call.1} parent=71 // pred_check
          %p964 = pneg %p237
        $region82: #{tpu_custom_call.1} parent=71 // pred_check_branch
          %966 = sbr.rel (%p964) target = $region84
        $region83: #{tpu_custom_call.1} parent=71 // pred_region
          %s967 = sand.u32 %s32, 1
          %s968 = scalar_lea.sflag [#allocation13], %s967
          %s969 = sand.u32 %s222, 1
          %s970 = smul.addr %s969, 32
          %s971 = scalar_lea.vmem [#allocation14], %s970
          %972 = dma.done %s968, 512
        $region84: #{tpu_custom_call.1} parent=71 // pred_fallthru
          _
      $region72: #{tpu_custom_call.1} parent=5 // pred_fallthru
        _
    $region6: #{tpu_custom_call.1} parent=1 // loop_footer
      %s30 = sadd.s32 1, %s26
    $region7: #{tpu_custom_call.1} parent=1 // loop_footer_branch
      %25 = sbr.rel target = $region3
    $region8: #{tpu_custom_call.1} parent=1 // loop_exit
      _
    %973 = vsyncpa [#allocation4], 1
    %s974 = scalar_lea.sflag [#allocation4], 1
    %975 = vsyncpa %s974, 1
    %976 = vsyncpa [#allocation7], 1
    %977 = vsyncpa [#allocation10], 1
    %978 = vsyncpa [#allocation5], 1
    %s979 = scalar_lea.sflag [#allocation5], 1
    %980 = vsyncpa %s979, 1
    %981 = vsyncpa [#allocation13], 1
    %s982 = scalar_lea.sflag [#allocation13], 1
    %983 = vsyncpa %s982, 1

</llo_original>
